<compile_context>
chip_gen: v6e
topology: v6e:2x2x1
jax: 0.10.0
libtpu: 0.0.40
codegen_flags: <defaults>
</compile_context>

<pallas_src>
import functools

import jax
import jax.numpy as jnp
from jax.experimental import pallas as pl
from jax.experimental.pallas import tpu as pltpu


def _round_up(x, m):
    return ((x + m - 1) // m) * m


def _nonlinear(h, activation):
    if activation == "relu":
        return jnp.maximum(h, 0.0)
    if activation == "gelu":  # exact erf form, matches F.gelu default
        return 0.5 * h * (1.0 + jax.lax.erf(h * (0.5 ** 0.5)))
    if activation == "gelu_tanh":  # opt-in tanh approximation (EUP-friendly, v5e)
        return jax.nn.gelu(h, approximate=True)
    raise ValueError(activation)


# ---------------------------------------------------------------------------
# Kernels
# ---------------------------------------------------------------------------

def ffn_kernel_resident(x_ref, w1_ref, b1_ref, w2_ref, b2_ref, o_ref, *, activation):
    """Weights fully resident in VMEM: 1-D grid over row tiles, single pass."""
    x = x_ref[...]
    h = jnp.dot(x, w1_ref[...], preferred_element_type=jnp.float32)
    h = h + b1_ref[...].astype(jnp.float32)
    h = _nonlinear(h, activation)
    # TODO(synk): training-mode relu_dropout (p > 0) not implemented; p=0 -> identity.
    h = h.astype(x.dtype)  # fast MXU path for bf16 inputs (f32 accumulation kept)
    y = jnp.dot(h, w2_ref[...], preferred_element_type=jnp.float32)
    y = y + b2_ref[...].astype(jnp.float32)
    o_ref[...] = y.astype(o_ref.dtype)


def ffn_kernel_tiled(x_ref, w1_ref, b1_ref, w2_ref, b2_ref, o_ref, acc_ref, *, activation):
    """Hidden dimension tiled (reduction axis j); f32 accumulator in VMEM."""
    j = pl.program_id(1)

    @pl.when(j == 0)
    def _init():
        acc_ref[...] = jnp.zeros_like(acc_ref)

    x = x_ref[...]
    h = jnp.dot(x, w1_ref[...], preferred_element_type=jnp.float32)
    h = h + b1_ref[...].astype(jnp.float32)
    h = _nonlinear(h, activation)
    # TODO(synk): training-mode relu_dropout (p > 0) not implemented; p=0 -> identity.
    h = h.astype(x.dtype)
    acc_ref[...] += jnp.dot(h, w2_ref[...], preferred_element_type=jnp.float32)

    @pl.when(j == pl.num_programs(1) - 1)
    def _finalize():
        # b2 fused into the finalize (no per-i broadcast init of the acc).
        o_ref[...] = (acc_ref[...] + b2_ref[...].astype(jnp.float32)).astype(o_ref.dtype)


# ---------------------------------------------------------------------------
# Sizing policy
# ---------------------------------------------------------------------------

def _vmem_budget_bytes():
    """(physical VMEM bytes, usable budget) for the current TPU generation."""
    cap = 64 * 1024 * 1024  # conservative fallback (v7x per-TensorCore VMEM)
    try:
        info = pltpu.get_tpu_info()
        cap = int(getattr(info, "vmem_capacity_bytes", cap)) or cap
    except Exception:
        pass
    # Headroom for Mosaic internal scratch / pipeline bookkeeping:
    # ~80% of physical, never closer than 16 MiB to the top.
    budget = min(cap - 16 * 1024 * 1024, int(0.80 * cap))
    return cap, max(budget, 16 * 1024 * 1024)


def _weight_stream_spec(shape, index_map):
    """Triple-buffer streamed weight tiles to hide the j==0 DMA burst."""
    try:
        return pl.BlockSpec(shape, index_map, pipeline_mode=pl.Buffered(3))
    except Exception:
        return pl.BlockSpec(shape, index_map)


def _select_tiles(M, dim, H, itemsize, budget, force_tm=None, force_th=None):
    """Returns (tm, th, vmem_estimate). th is None for full hidden residency."""
    granule = 8 * max(1, 4 // itemsize)       # 8 for f32, 16 for bf16, 32 for int8
    tm_target = 1024 if itemsize <= 2 else 512

    tm_cap = _round_up(max(M, 1), granule)

    # Hidden-tile candidates: multiples of 128 dividing H (descending), <= 2048.
    if force_th is not None:
        th_candidates = [force_th]
    else:
        th_candidates = []
        c = min(_round_up(H, 128), 2048)
        while c >= 128:
            if H % c == 0:
                th_candidates.append(c)
            c -= 128

    # Row-tile candidates (descending).
    if force_tm is not None:
        tm_candidates = [_round_up(min(force_tm, tm_cap), granule)]
    else:
        tm_candidates = []
        t = _round_up(min(tm_target, tm_cap), granule)
        while True:
            tm_candidates.append(t)
            if t <= granule:
                break
            t = _round_up(t // 2, granule)

    def est_resident(tm):
        # x + out tiles double-buffered; W1/W2/biases resident (counted 2x, safe).
        return (2 * tm * dim + 2 * dim * H + 2 * H * dim
                + 2 * tm * dim + 2 * (H + dim)) * itemsize

    def est_tiled(tm, th):
        # Streamed weight tiles triple-buffered; f32 accumulator.
        return ((2 * tm * dim + 3 * dim * th + 2 * th
                 + 3 * th * dim + 2 * dim + 2 * tm * dim) * itemsize
                + tm * dim * 4)

    if force_th is None:
        # Prefer full hidden residency: W1/W2 are DMA'd into VMEM exactly once
        # for the whole kernel (constant index map), no acc RMW per j step.
        for tm in tm_candidates:
            if est_resident(tm) <= budget:
                return tm, None, est_resident(tm)

    for tm in tm_candidates:
        for th in th_candidates:
            if est_tiled(tm, th) <= budget:
                return tm, th, est_tiled(tm, th)

    # Last resort (e.g. dim_hidden not tileable by 128, or gigantic dims):
    # smallest tiles; vmem_limit is raised to cover the estimate below.
    tm = tm_candidates[-1]
    if th_candidates:
        return tm, th_candidates[-1], est_tiled(tm, th_candidates[-1])
    return tm, None, est_resident(tm)


# ---------------------------------------------------------------------------
# Public wrapper
# ---------------------------------------------------------------------------

def transformer_ffn(x, w1, b1, w2, b2, *, activation="relu", relu_dropout=0.0,
                    force_row_tile=None, force_hidden_tile=None):
    """x: [..., dim]; w1: [dim, dim_hidden]; b1: [dim_hidden];
    w2: [dim_hidden, dim]; b2: [dim]."""
    assert activation in ("relu", "gelu", "gelu_tanh")
    # Dropout is only correct as identity here (inference / p=0).
    assert relu_dropout == 0.0, "training-mode relu_dropout not supported"

    orig_shape = x.shape
    dim = x.shape[-1]
    M = 1
    for s in x.shape[:-1]:
        M *= s
    dim_hidden = w1.shape[1]
    assert w1.shape == (dim, dim_hidden)
    assert w2.shape == (dim_hidden, dim)
    if force_hidden_tile is not None:
        assert dim_hidden % force_hidden_tile == 0
        assert force_hidden_tile % 128 == 0 or force_hidden_tile == dim_hidden

    itemsize = jnp.dtype(x.dtype).itemsize
    cap, budget = _vmem_budget_bytes()

    tm, th, est = _select_tiles(M, dim, dim_hidden, itemsize, budget,
                                force_tm=force_row_tile, force_th=force_hidden_tile)

    granule = 8 * max(1, 4 // itemsize)
    # v7x megacore: keep at least 2 i-tiles on the "parallel" row axis so both
    # TensorCores get work; shrink tm for small M rather than one big tile.
    if force_row_tile is None and _round_up(M, tm) // tm < 2 and M > granule:
        tm = _round_up(-(-M // 2), granule)

    M_pad = _round_up(M, tm)
    n_i = M_pad // tm

    x2d = x.reshape(M, dim)
    if M_pad != M:
        x2d = jnp.pad(x2d, ((0, M_pad - M), (0, 0)))
    b1_2d = b1.reshape(1, dim_hidden)
    b2_2d = b2.reshape(1, dim)

    # VMEM limit: per-generation budget, raised if the conservative estimate
    # needs more, never above physical capacity minus a small headroom.
    vmem_limit = max(budget, int(est * 1.25), 32 * 1024 * 1024)
    vmem_limit = int(min(vmem_limit, cap - 4 * 1024 * 1024))

    flops = 4 * M_pad * dim * dim_hidden
    transcendentals = M_pad * dim_hidden if activation != "relu" else 0
    weight_streams = 1 if th is None else n_i
    bytes_accessed = itemsize * (2 * M_pad * dim
                                 + weight_streams * 2 * dim * dim_hidden
                                 + dim_hidden + dim)
    try:
        cost = pl.CostEstimate(flops=flops, transcendentals=transcendentals,
                               bytes_accessed=bytes_accessed)
    except Exception:
        cost = None

    if th is None:
        # Weights-resident path: 1-D grid over row tiles.
        kernel = functools.partial(ffn_kernel_resident, activation=activation)
        grid_spec = pltpu.PrefetchScalarGridSpec(
            num_scalar_prefetch=0,
            grid=(n_i,),
            in_specs=[
                pl.BlockSpec((tm, dim), lambda i: (i, 0)),             # x rows
                pl.BlockSpec((dim, dim_hidden), lambda i: (0, 0)),     # W1 (resident)
                pl.BlockSpec((1, dim_hidden), lambda i: (0, 0)),       # b1
                pl.BlockSpec((dim_hidden, dim), lambda i: (0, 0)),     # W2 (resident)
                pl.BlockSpec((1, dim), lambda i: (0, 0)),              # b2
            ],
            out_specs=pl.BlockSpec((tm, dim), lambda i: (i, 0)),
        )
        dim_sem = ("parallel",)
    else:
        # Hidden-tiled path: reduction axis j innermost, f32 accumulator.
        kernel = functools.partial(ffn_kernel_tiled, activation=activation)
        grid_spec = pltpu.PrefetchScalarGridSpec(
            num_scalar_prefetch=0,
            grid=(n_i, dim_hidden // th),
            in_specs=[
                pl.BlockSpec((tm, dim), lambda i, j: (i, 0)),          # x rows
                _weight_stream_spec((dim, th), lambda i, j: (0, j)),   # W1 cols
                pl.BlockSpec((1, th), lambda i, j: (0, j)),            # b1 slice
                _weight_stream_spec((th, dim), lambda i, j: (j, 0)),   # W2 rows
                pl.BlockSpec((1, dim), lambda i, j: (0, 0)),           # b2
            ],
            out_specs=pl.BlockSpec((tm, dim), lambda i, j: (i, 0)),
            scratch_shapes=[pltpu.VMEM((tm, dim), jnp.float32)],
        )
        dim_sem = ("parallel", "arbitrary")

    out2d = pl.pallas_call(
        kernel,
        out_shape=jax.ShapeDtypeStruct((M_pad, dim), x.dtype),
        grid_spec=grid_spec,
        compiler_params=pltpu.CompilerParams(
            dimension_semantics=dim_sem,
            vmem_limit_bytes=vmem_limit,
        ),
        cost_estimate=cost,
    )(x2d, w1, b1_2d, w2, b2_2d)

    if M_pad != M:
        out2d = out2d[:M]
    return out2d.reshape(orig_shape)


# ---------------------------------------------------------------------------
# Init + tests
# ---------------------------------------------------------------------------

def init_params(key, dim, dim_hidden, dtype=jnp.float32):
    """Deterministic init matching nn.Linear + xavier_uniform on weights."""
    k1, k2, k3, k4 = jax.random.split(key, 4)
    bound1 = (6.0 / (dim + dim_hidden)) ** 0.5
    bound2 = (6.0 / (dim_hidden + dim)) ** 0.5
    # stored as [in, out] (transpose of PyTorch's [out, in] layout)
    w1 = jax.random.uniform(k1, (dim, dim_hidden), jnp.float32, -bound1, bound1).astype(dtype)
    w2 = jax.random.uniform(k2, (dim_hidden, dim), jnp.float32, -bound2, bound2).astype(dtype)
    bb1 = 1.0 / (dim ** 0.5)
    bb2 = 1.0 / (dim_hidden ** 0.5)
    b1 = jax.random.uniform(k3, (dim_hidden,), jnp.float32, -bb1, bb1).astype(dtype)
    b2 = jax.random.uniform(k4, (dim,), jnp.float32, -bb2, bb2).astype(dtype)
    return w1, b1, w2, b2


if __name__ == "__main__":
    key = jax.random.PRNGKey(0)
    k1, k2, k3, k4, k5, k6 = jax.random.split(key, 6)

    # Test 1: module defaults (relu, p=0), small shapes -> weights-resident path.
    B, T, dim, dh = 2, 8, 32, 64
    x = jax.random.normal(k1, (B, T, dim), jnp.float32)
    w1, b1, w2, b2 = init_params(k2, dim, dh)
    out = jax.block_until_ready(transformer_ffn(x, w1, b1, w2, b2))
    ref = jnp.maximum(x @ w1 + b1, 0.0) @ w2 + b2
    assert out.shape == (B, T, dim)
    assert jnp.allclose(out, ref, atol=1e-4, rtol=1e-4)

    # Test 2: gelu, ragged M (B*T not a tile multiple), forced hidden tiling
    # -> exercises the accumulator/reduction path (grid=(2, 4)).
    B2, T2, dim2, dh2 = 2, 9, 128, 512
    x2 = jax.random.normal(k3, (B2, T2, dim2), jnp.float32)
    w1b, b1b, w2b, b2b = init_params(k4, dim2, dh2)
    out2 = jax.block_until_ready(
        transformer_ffn(x2, w1b, b1b, w2b, b2b, activation="gelu",
                        force_hidden_tile=128))
    h2 = x2 @ w1b + b1b
    ref2 = (0.5 * h2 * (1.0 + jax.lax.erf(h2 * (0.5 ** 0.5)))) @ w2b + b2b
    assert out2.shape == (B2, T2, dim2)
    assert jnp.allclose(out2, ref2, atol=1e-3, rtol=1e-3)

    # Test 3: bf16 inputs/weights (fast-MXU cast path), loose tolerance.
    x3 = jax.random.normal(k5, (2, 8, 128), jnp.bfloat16)
    w1c, b1c, w2c, b2c = init_params(k6, 128, 256, jnp.bfloat16)
    out3 = jax.block_until_ready(transformer_ffn(x3, w1c, b1c, w2c, b2c))
    ref3 = (jnp.maximum(x3.astype(jnp.float32) @ w1c.astype(jnp.float32)
                        + b1c.astype(jnp.float32), 0.0)
            @ w2c.astype(jnp.float32) + b2c.astype(jnp.float32))
    assert out3.shape == x3.shape
    assert jnp.allclose(out3.astype(jnp.float32), ref3, atol=5e-2, rtol=5e-2)

    print("KERNEL_OK")
</pallas_src>

<mosaic_0001>
module attributes {stable_mosaic.version = 11 : i64} {
  func.func @ffn_kernel_resident(%arg0: i32, %arg1: memref<8x32xf32, #tpu.memory_space<vmem>>, %arg2: memref<32x64xf32, #tpu.memory_space<vmem>>, %arg3: memref<1x64xf32, #tpu.memory_space<vmem>>, %arg4: memref<64x32xf32, #tpu.memory_space<vmem>>, %arg5: memref<1x32xf32, #tpu.memory_space<vmem>>, %arg6: memref<8x32xf32, #tpu.memory_space<vmem>>) attributes {dimension_semantics = [#tpu.dimension_semantics<parallel>], iteration_bounds = array<i64: 2>, scalar_prefetch = 0 : i64, scratch_operands = 0 : i64, tpu.core_type = #tpu.core_type<tc>, window_params = [{transform_indices = @transform_0, window_bounds = array<i64: 8, 32>}, {pipeline_mode = #tpu.pipeline_mode<synchronous>, transform_indices = @transform_1, window_bounds = array<i64: 32, 64>}, {pipeline_mode = #tpu.pipeline_mode<synchronous>, transform_indices = @transform_2, window_bounds = array<i64: 1, 64>}, {pipeline_mode = #tpu.pipeline_mode<synchronous>, transform_indices = @transform_3, window_bounds = array<i64: 64, 32>}, {pipeline_mode = #tpu.pipeline_mode<synchronous>, transform_indices = @transform_4, window_bounds = array<i64: 1, 32>}, {transform_indices = @transform_5, window_bounds = array<i64: 8, 32>}]} {
    %c0 = arith.constant 0 : index
    %c0_0 = arith.constant 0 : index
    %0 = vector.load %arg1[%c0, %c0_0] : memref<8x32xf32, #tpu.memory_space<vmem>>, vector<8x32xf32>
    %c0_1 = arith.constant 0 : index
    %c0_2 = arith.constant 0 : index
    %1 = vector.load %arg2[%c0_1, %c0_2] : memref<32x64xf32, #tpu.memory_space<vmem>>, vector<32x64xf32>
    %cst = arith.constant dense<0.000000e+00> : vector<8x64xf32>
    %2 = tpu.matmul %0, %1, %cst {dimension_numbers = #tpu.dot_dimension_numbers<[1], [0], [0], [1], [0, 0, 1, 1], [], []>} : vector<8x32xf32>, vector<32x64xf32>, vector<8x64xf32> -> vector<8x64xf32>
    %c0_3 = arith.constant 0 : index
    %c0_4 = arith.constant 0 : index
    %3 = vector.load %arg3[%c0_3, %c0_4] : memref<1x64xf32, #tpu.memory_space<vmem>>, vector<1x64xf32>
    %4 = vector.broadcast %3 : vector<1x64xf32> to vector<8x64xf32>
    %5 = arith.addf %2, %4 : vector<8x64xf32>
    %cst_5 = arith.constant 0.000000e+00 : f32
    %6 = vector.broadcast %cst_5 : f32 to vector<8x64xf32>
    %7 = arith.maximumf %5, %6 : vector<8x64xf32>
    %c0_6 = arith.constant 0 : index
    %c0_7 = arith.constant 0 : index
    %8 = vector.load %arg4[%c0_6, %c0_7] : memref<64x32xf32, #tpu.memory_space<vmem>>, vector<64x32xf32>
    %cst_8 = arith.constant dense<0.000000e+00> : vector<8x32xf32>
    %9 = tpu.matmul %7, %8, %cst_8 {dimension_numbers = #tpu.dot_dimension_numbers<[1], [0], [0], [1], [0, 0, 1, 1], [], []>} : vector<8x64xf32>, vector<64x32xf32>, vector<8x32xf32> -> vector<8x32xf32>
    %c0_9 = arith.constant 0 : index
    %c0_10 = arith.constant 0 : index
    %10 = vector.load %arg5[%c0_9, %c0_10] : memref<1x32xf32, #tpu.memory_space<vmem>>, vector<1x32xf32>
    %11 = vector.broadcast %10 : vector<1x32xf32> to vector<8x32xf32>
    %12 = arith.addf %9, %11 : vector<8x32xf32>
    %c0_11 = arith.constant 0 : index
    %c0_12 = arith.constant 0 : index
    %13 = vector.load %arg6[%c0_11, %c0_12] : memref<8x32xf32, #tpu.memory_space<vmem>>, vector<8x32xf32>
    tpu.vector_store %arg6[%c0_11, %c0_12], %12 {strides = array<i32>} : memref<8x32xf32, #tpu.memory_space<vmem>>, vector<8x32xf32>,
    return
  }
  func.func @transform_0(%arg0: i32) -> (i32, i32) {
    %c0_i32 = arith.constant 0 : i32
    %c0_i32_0 = arith.constant 0 : i32
    return %arg0, %c0_i32 : i32, i32
  }
  func.func @transform_1(%arg0: i32) -> (i32, i32) {
    %c0_i32 = arith.constant 0 : i32
    %c0_i32_0 = arith.constant 0 : i32
    %c0_i32_1 = arith.constant 0 : i32
    return %c0_i32, %c0_i32_0 : i32, i32
  }
  func.func @transform_2(%arg0: i32) -> (i32, i32) {
    %c0_i32 = arith.constant 0 : i32
    %c0_i32_0 = arith.constant 0 : i32
    %c0_i32_1 = arith.constant 0 : i32
    return %c0_i32, %c0_i32_0 : i32, i32
  }
  func.func @transform_3(%arg0: i32) -> (i32, i32) {
    %c0_i32 = arith.constant 0 : i32
    %c0_i32_0 = arith.constant 0 : i32
    %c0_i32_1 = arith.constant 0 : i32
    return %c0_i32, %c0_i32_0 : i32, i32
  }
  func.func @transform_4(%arg0: i32) -> (i32, i32) {
    %c0_i32 = arith.constant 0 : i32
    %c0_i32_0 = arith.constant 0 : i32
    %c0_i32_1 = arith.constant 0 : i32
    return %c0_i32, %c0_i32_0 : i32, i32
  }
  func.func @transform_5(%arg0: i32) -> (i32, i32) {
    %c0_i32 = arith.constant 0 : i32
    %c0_i32_0 = arith.constant 0 : i32
    return %arg0, %c0_i32 : i32, i32
  }
}

</mosaic_0001>

<llo_original>
// kernel: tpu_custom_call.1
$region0: #{tpu_custom_call.1}
  #allocation0 [shape = 'u32[]', space=smem, size = 0x4, offset = 0x4, fixed_abs, tag = 'smem constant byte address 0x4 - core index']
  #allocation1 [shape = 'u32[144,128]{1,0:T(1,128)}', space=vmem, size = 0x12000, scoped, tag = 'internal scratch']
  %s0 = inlined_call_operand.vmem [shape: f32[16,32], index: 0, kind: input, shape index: {}]
  %s1 = inlined_call_operand.vmem [shape: f32[32,64], index: 1, kind: input, shape index: {}]
  %s2 = inlined_call_operand.vmem [shape: f32[1,64], index: 2, kind: input, shape index: {}]
  %s3 = inlined_call_operand.vmem [shape: f32[64,32], index: 3, kind: input, shape index: {}]
  %s4 = inlined_call_operand.vmem [shape: f32[1,32], index: 4, kind: input, shape index: {}]
  %s5 = inlined_call_operand.hbm [shape: f32[16,32], index: 5, kind: output, shape index: {}]
  %s6 = sld [smem:[#allocation0]]
  $region53: #{tpu_custom_call.1} parent=0
    _
  %s8 = ssub.s32 1, %s6
  %s9 = scalar_select 0, %s8, %s6
  $region1: #{tpu_custom_call.1} parent=0
    #allocation2 [shape = 'u8[8192]{0}', space=vmem, size = 0x2000, scoped, tag = 'output window, operand 0']
    #allocation3 [shape = 's32[2]{0}', space=sflag, size = 0x8, scoped, tag = 'scoped memory for tpu_custom_call.1']
    %10 = vsyncpa [#allocation3], 0
    %s11 = scalar_lea.sflag [#allocation3], 1
    %12 = vsyncpa %s11, 0
    loop: start=0, step=1, limit=4
    $region2: #{tpu_custom_call.1} parent=1 // loop_pre_header
      _
    $region3: #{tpu_custom_call.1} parent=1 // loop_header
      %s14 = sphi 0, %s18
      %p15 = scmp.ge.s32.totalorder %s14, 4
      %s24 = sphi 0, %s26
      %s27 = sphi 0, %s24
      %s28 = sphi 0, %s27
      %s44 = sphi 0, %s28
      %s48 = sphi 0, %s48
      %s50 = sphi 0, %s48
      %s51 = sphi 0, %s50
      %s65 = sphi 0, %s51
      %s69 = sphi 0, %s69
      %s71 = sphi 0, %s69
      %s72 = sphi 0, %s71
      %s86 = sphi 0, %s72
      %s90 = sphi 0, %s90
      %s92 = sphi 0, %s90
      %s93 = sphi 0, %s92
      %s107 = sphi 0, %s93
      %s111 = sphi 0, %s111
      %s113 = sphi 0, %s111
      %s114 = sphi 0, %s113
      %s128 = sphi 0, %s114
      %s134 = sphi 0, %s136
      %s137 = sphi 0, %s134
      %s138 = sphi 0, %s137
      %s154 = sphi 0, %s138
    $region4: #{tpu_custom_call.1} parent=1 // loop_header_branch
      %17 = sbr.rel (%p15) target = $region8
    $region5: #{tpu_custom_call.1} parent=1 // loop_body
      %s19 = ssub.s32 %s14, 1
      %s20 = ssub.s32 %s14, 2
      %s21 = sadd.s32 %s14, 1
      %s22 = ssub.s32 %s14, %s21
      %p23 = scmp.eq.s32.totalorder %s22, 0
      %s25 = sadd.s32 %s24, 1
      %s26 = scalar_select %p23, %s24, %s25
      %p29 = pneg %p23
      %p30 = scmp.eq.s32.totalorder %s14, 1
      %p31 = por %p29, %p30
      %p32 = scmp.ne.s32.totalorder %s24, %s27
      %p33 = scmp.eq.s32.totalorder %s14, 0
      %p34 = por %p32, %p33
      %p35 = scmp.ne.s32.totalorder %s24, %s27
      %p36 = scmp.eq.s32.totalorder %s19, 1
      %p37 = por %p35, %p36
      %p38 = scmp.ne.s32.totalorder %s27, %s28
      %p39 = scmp.eq.s32.totalorder %s19, 0
      %p40 = por %p38, %p39
      %p41 = scmp.ne.s32.totalorder %s27, %s28
      %p42 = scmp.eq.s32.totalorder %s20, 1
      %p43 = por %p41, %p42
      %p45 = scmp.ne.s32.totalorder %s28, %s44
      %p46 = scmp.eq.s32.totalorder %s20, 0
      %p47 = por %p45, %p46
      %s49 = sadd.s32 %s48, 1
      %p52 = scmp.eq.s32.totalorder %s14, 1
      %p53 = scmp.ne.s32.totalorder %s48, %s50
      %p54 = scmp.eq.s32.totalorder %s14, 0
      %p55 = por %p53, %p54
      %p56 = scmp.ne.s32.totalorder %s48, %s50
      %p57 = scmp.eq.s32.totalorder %s19, 1
      %p58 = por %p56, %p57
      %p59 = scmp.ne.s32.totalorder %s50, %s51
      %p60 = scmp.eq.s32.totalorder %s19, 0
      %p61 = por %p59, %p60
      %p62 = scmp.ne.s32.totalorder %s50, %s51
      %p63 = scmp.eq.s32.totalorder %s20, 1
      %p64 = por %p62, %p63
      %p66 = scmp.ne.s32.totalorder %s51, %s65
      %p67 = scmp.eq.s32.totalorder %s20, 0
      %p68 = por %p66, %p67
      %s70 = sadd.s32 %s69, 1
      %p73 = scmp.eq.s32.totalorder %s14, 1
      %p74 = scmp.ne.s32.totalorder %s69, %s71
      %p75 = scmp.eq.s32.totalorder %s14, 0
      %p76 = por %p74, %p75
      %p77 = scmp.ne.s32.totalorder %s69, %s71
      %p78 = scmp.eq.s32.totalorder %s19, 1
      %p79 = por %p77, %p78
      %p80 = scmp.ne.s32.totalorder %s71, %s72
      %p81 = scmp.eq.s32.totalorder %s19, 0
      %p82 = por %p80, %p81
      %p83 = scmp.ne.s32.totalorder %s71, %s72
      %p84 = scmp.eq.s32.totalorder %s20, 1
      %p85 = por %p83, %p84
      %p87 = scmp.ne.s32.totalorder %s72, %s86
      %p88 = scmp.eq.s32.totalorder %s20, 0
      %p89 = por %p87, %p88
      %s91 = sadd.s32 %s90, 1
      %p94 = scmp.eq.s32.totalorder %s14, 1
      %p95 = scmp.ne.s32.totalorder %s90, %s92
      %p96 = scmp.eq.s32.totalorder %s14, 0
      %p97 = por %p95, %p96
      %p98 = scmp.ne.s32.totalorder %s90, %s92
      %p99 = scmp.eq.s32.totalorder %s19, 1
      %p100 = por %p98, %p99
      %p101 = scmp.ne.s32.totalorder %s92, %s93
      %p102 = scmp.eq.s32.totalorder %s19, 0
      %p103 = por %p101, %p102
      %p104 = scmp.ne.s32.totalorder %s92, %s93
      %p105 = scmp.eq.s32.totalorder %s20, 1
      %p106 = por %p104, %p105
      %p108 = scmp.ne.s32.totalorder %s93, %s107
      %p109 = scmp.eq.s32.totalorder %s20, 0
      %p110 = por %p108, %p109
      %s112 = sadd.s32 %s111, 1
      %p115 = scmp.eq.s32.totalorder %s14, 1
      %p116 = scmp.ne.s32.totalorder %s111, %s113
      %p117 = scmp.eq.s32.totalorder %s14, 0
      %p118 = por %p116, %p117
      %p119 = scmp.ne.s32.totalorder %s111, %s113
      %p120 = scmp.eq.s32.totalorder %s19, 1
      %p121 = por %p119, %p120
      %p122 = scmp.ne.s32.totalorder %s113, %s114
      %p123 = scmp.eq.s32.totalorder %s19, 0
      %p124 = por %p122, %p123
      %p125 = scmp.ne.s32.totalorder %s113, %s114
      %p126 = scmp.eq.s32.totalorder %s20, 1
      %p127 = por %p125, %p126
      %p129 = scmp.ne.s32.totalorder %s114, %s128
      %p130 = scmp.eq.s32.totalorder %s20, 0
      %p131 = por %p129, %p130
      %s132 = ssub.s32 %s14, %s21
      %p133 = scmp.eq.s32.totalorder %s132, 0
      %s135 = sadd.s32 %s134, 1
      %s136 = scalar_select %p133, %s134, %s135
      %p139 = pneg %p133
      %p140 = scmp.eq.s32.totalorder %s14, 1
      %p141 = por %p139, %p140
      %p142 = scmp.ne.s32.totalorder %s134, %s137
      %p143 = scmp.eq.s32.totalorder %s14, 0
      %p144 = por %p142, %p143
      %p145 = scmp.ne.s32.totalorder %s134, %s137
      %p146 = scmp.eq.s32.totalorder %s19, 1
      %p147 = por %p145, %p146
      %p148 = scmp.ne.s32.totalorder %s137, %s138
      %p149 = scmp.eq.s32.totalorder %s19, 0
      %p150 = por %p148, %p149
      %p151 = scmp.ne.s32.totalorder %s137, %s138
      %p152 = scmp.eq.s32.totalorder %s20, 1
      %p153 = por %p151, %p152
      %p155 = scmp.ne.s32.totalorder %s138, %s154
      %p156 = scmp.eq.s32.totalorder %s20, 0
      %p157 = por %p155, %p156
      %p158 = scmp.le.s32.totalorder 1, %s14
      %p159 = scmp.lt.s32.totalorder %s14, 3
      %p160 = pnand %p158, %p159
      %p161 = pneg %p160
      // Predicated region
      $region9: #{tpu_custom_call.1} parent=5 // pred_check
        _
      $region10: #{tpu_custom_call.1} parent=5 // pred_check_branch
        %163 = sbr.rel (%p160) target = $region12
      $region11: #{tpu_custom_call.1} parent=5 // pred_region
        %s164 = ssub.s32 %s14, 1
        // Predicated region
        $region13: #{tpu_custom_call.1} parent=11 // pred_check
          %p165 = pneg %p61
        $region14: #{tpu_custom_call.1} parent=11 // pred_check_branch
          %167 = sbr.rel (%p165) target = $region16
        $region15: #{tpu_custom_call.1} parent=11 // pred_region
          _
        $region16: #{tpu_custom_call.1} parent=11 // pred_fallthru
          _
        // Predicated region
        $region17: #{tpu_custom_call.1} parent=11 // pred_check
          %p168 = pneg %p82
        $region18: #{tpu_custom_call.1} parent=11 // pred_check_branch
          %170 = sbr.rel (%p168) target = $region20
        $region19: #{tpu_custom_call.1} parent=11 // pred_region
          _
        $region20: #{tpu_custom_call.1} parent=11 // pred_fallthru
          _
        // Predicated region
        $region21: #{tpu_custom_call.1} parent=11 // pred_check
          %p171 = pneg %p103
        $region22: #{tpu_custom_call.1} parent=11 // pred_check_branch
          %173 = sbr.rel (%p171) target = $region24
        $region23: #{tpu_custom_call.1} parent=11 // pred_region
          _
        $region24: #{tpu_custom_call.1} parent=11 // pred_fallthru
          _
        // Predicated region
        $region25: #{tpu_custom_call.1} parent=11 // pred_check
          %p174 = pneg %p124
        $region26: #{tpu_custom_call.1} parent=11 // pred_check_branch
          %176 = sbr.rel (%p174) target = $region28
        $region27: #{tpu_custom_call.1} parent=11 // pred_region
          _
        $region28: #{tpu_custom_call.1} parent=11 // pred_fallthru
          _
      $region12: #{tpu_custom_call.1} parent=5 // pred_fallthru
        _
      %p177 = scmp.lt.s32.totalorder %s14, 2
      // Predicated region
      $region29: #{tpu_custom_call.1} parent=5 // pred_check
        %p178 = pneg %p177
      $region30: #{tpu_custom_call.1} parent=5 // pred_check_branch
        %180 = sbr.rel (%p178) target = $region32
      $region31: #{tpu_custom_call.1} parent=5 // pred_region
        // Predicated region
        $region33: #{tpu_custom_call.1} parent=31 // pred_check
          %p181 = pneg %p34
        $region34: #{tpu_custom_call.1} parent=31 // pred_check_branch
          %183 = sbr.rel (%p181) target = $region36
        $region35: #{tpu_custom_call.1} parent=31 // pred_region
          %p184 = scmp.lt.s32.totalorder %s14, 1
          %s185 = scalar_select %p184, %s14, 1
          %s186 = smul.addr %s185, 8
          %s187 = scalar_lea.vmem %s0, %s186
        $region36: #{tpu_custom_call.1} parent=31 // pred_fallthru
          _
      $region32: #{tpu_custom_call.1} parent=5 // pred_fallthru
        _
      %p188 = scmp.le.s32.totalorder 1, %s14
      %p189 = scmp.lt.s32.totalorder %s14, 3
      %p190 = pnand %p188, %p189
      %p191 = pneg %p190
      // Predicated region
      $region37: #{tpu_custom_call.1} parent=5 // pred_check
        _
      $region38: #{tpu_custom_call.1} parent=5 // pred_check_branch
        %193 = sbr.rel (%p190) target = $region40
      $region39: #{tpu_custom_call.1} parent=5 // pred_region
        %s194 = ssub.s32 %s14, 1
        %p195 = scmp.lt.s32.totalorder %s19, 1
        %s196 = scalar_select %p195, %s19, 1
        %s197 = smul.addr %s196, 8
        %s198 = scalar_lea.vmem %s0, %s197
        %p199 = pneg %p40
        %p200 = pneg %p37
        %p201 = pneg %p61
        %p202 = pneg %p58
        %p203 = pneg %p82
        %p204 = pneg %p79
        %p205 = pneg %p103
        %p206 = pneg %p100
        %p207 = pneg %p124
        %p208 = pneg %p121
        %p209 = pneg %p150
        %p210 = pneg %p147
        %s211 = sand.u32 %s137, 1
        %s212 = scalar_lea.sflag [#allocation3], %s211
        %s213 = sand.u32 %s137, 1
        %s214 = smul.addr %s213, 8
        %s215 = scalar_lea.vmem [#allocation2], %s214
        %p216 = scmp.lt.s32.totalorder %s19, 1
        %s217 = scalar_select %p216, %s19, 1
        %s218 = smul.addr %s217, 8
        %s219 = scalar_lea.vmem %s0, %s218
        %v220 = vld [vmem:[%s219] sm:$0xff]
        %v221 = vld [vmem:[%s1] sm:$0xff]
        %v222 = vld [vmem:[%s1 + $0x8] sm:$0xff]
        %v223 = vld [vmem:[%s1 + $0x10] sm:$0xff]
        %v224 = vld [vmem:[%s1 + $0x18] sm:$0xff]
        %v225 = vld [vmem:[%s2] sm:$0x1]
        %v227 = vlaneseq
        %v228 = vshrl.u32 %v227, 7
        %v229 = vsub.s32 0, %v228
        %v230 = vrot.slane %v225, %v229
        %vm232 = vcmask 261120
        %v234 = vsel %vm232, %v220, 0
        %236 = vmatprep.subr.mxu0 0.0
        %237 = vmatpush1.msra.mxu0 0.0
        %238 = vmatprep.subr.mxu0 0.0
        %239 = vmatpush1.msra.mxu0 0.0
        %240 = vmatprep.subr.mxu0 0.0
        %241 = vmatpush1.msra.mxu0 0.0
        %242 = vmatprep.subr.mxu0 0.0
        %243 = vmatpush1.msra.mxu0 0.0
        %244 = vmatprep.subr.mxu0 0.0
        %245 = vmatpush1.msra.mxu0 0.0
        %246 = vmatprep.subr.mxu0 0.0
        %247 = vmatpush1.msra.mxu0 0.0
        %248 = vmatprep.subr.mxu0 0.0
        %249 = vmatpush1.msra.mxu0 0.0
        %250 = vmatprep.subr.mxu0 0.0
        %251 = vmatpush1.msra.mxu0 0.0
        %252 = vmatprep.subr.mxu0 0.0
        %253 = vmatpush1.msra.mxu0 0.0
        %254 = vmatprep.subr.mxu0 0.0
        %255 = vmatpush1.msra.mxu0 0.0
        %256 = vmatprep.subr.mxu0 0.0
        %257 = vmatpush1.msra.mxu0 0.0
        %258 = vmatprep.subr.mxu0 0.0
        %259 = vmatpush1.msra.mxu0 0.0
        %260 = vmatprep.subr.mxu0 0.0
        %261 = vmatpush1.msra.mxu0 %v224
        %262 = vmatprep.subr.mxu0 0.0
        %263 = vmatpush1.msra.mxu0 %v223
        %264 = vmatprep.subr.mxu0 0.0
        %265 = vmatpush1.msra.mxu0 %v222
        %266 = vmatprep.subr.mxu0 0.0
        %267 = vmatpush1.msra.mxu0 %v221
        %268 = vmatprep.subr.mxu0 0.0
        %269 = vmatpush2.msra.mxu0 0.0
        %270 = vmatprep.subr.mxu0 0.0
        %271 = vmatpush2.msra.mxu0 0.0
        %272 = vmatprep.subr.mxu0 0.0
        %273 = vmatpush2.msra.mxu0 0.0
        %274 = vmatprep.subr.mxu0 0.0
        %275 = vmatpush2.msra.mxu0 0.0
        %276 = vmatprep.subr.mxu0 0.0
        %277 = vmatpush2.msra.mxu0 0.0
        %278 = vmatprep.subr.mxu0 0.0
        %279 = vmatpush2.msra.mxu0 0.0
        %280 = vmatprep.subr.mxu0 0.0
        %281 = vmatpush2.msra.mxu0 0.0
        %282 = vmatprep.subr.mxu0 0.0
        %283 = vmatpush2.msra.mxu0 0.0
        %284 = vmatprep.subr.mxu0 0.0
        %285 = vmatpush2.msra.mxu0 0.0
        %286 = vmatprep.subr.mxu0 0.0
        %287 = vmatpush2.msra.mxu0 0.0
        %288 = vmatprep.subr.mxu0 0.0
        %289 = vmatpush2.msra.mxu0 0.0
        %290 = vmatprep.subr.mxu0 0.0
        %291 = vmatpush2.msra.mxu0 0.0
        %292 = vmatprep.subr.mxu0 0.0
        %293 = vmatpush2.msra.mxu0 0.0
        %294 = vmatprep.subr.mxu0 0.0
        %295 = vmatpush2.msra.mxu0 0.0
        %296 = vmatprep.subr.mxu0 0.0
        %297 = vmatpush2.msra.mxu0 0.0
        %298 = vmatprep.subr.mxu0 0.0
        %299 = vmatpush2.msra.mxu0 0.0
        %300 = vmatprep.mubr.f32.mxu0 0.0
        %301 = vmatmul.mubr.f32.gmra.mxu0 %v234
        %v302 = vpop.f32.mrf.mxu0
        %v303 = vadd.f32 %v230, %v302
        %v304 = vpop.f32.mrf.mxu0
        %305 = vdwg.mxu0
        %v306 = vmax.f32 %v303, 0.0
        %v307 = vld [vmem:[%s3] sm:$0xff]
        %v308 = vld [vmem:[%s3 + $0x8] sm:$0xff]
        %v309 = vld [vmem:[%s3 + $0x10] sm:$0xff]
        %v310 = vld [vmem:[%s3 + $0x18] sm:$0xff]
        %v311 = vld [vmem:[%s3 + $0x20] sm:$0xff]
        %v312 = vld [vmem:[%s3 + $0x28] sm:$0xff]
        %v313 = vld [vmem:[%s3 + $0x30] sm:$0xff]
        %v314 = vld [vmem:[%s3 + $0x38] sm:$0xff]
        %v315 = vld [vmem:[%s4] sm:$0x1]
        %v317 = vlaneseq
        %v318 = vshrl.u32 %v317, 7
        %v319 = vsub.s32 0, %v318
        %v320 = vrot.slane %v315, %v319
        %vm322 = vcmask 523264
        %v324 = vsel %vm322, %v306, 0
        %326 = vmatprep.subr.mxu0 0.0
        %327 = vmatpush1.msra.mxu0 0.0
        %328 = vmatprep.subr.mxu0 0.0
        %329 = vmatpush1.msra.mxu0 0.0
        %330 = vmatprep.subr.mxu0 0.0
        %331 = vmatpush1.msra.mxu0 0.0
        %332 = vmatprep.subr.mxu0 0.0
        %333 = vmatpush1.msra.mxu0 0.0
        %334 = vmatprep.subr.mxu0 0.0
        %335 = vmatpush1.msra.mxu0 0.0
        %336 = vmatprep.subr.mxu0 0.0
        %337 = vmatpush1.msra.mxu0 0.0
        %338 = vmatprep.subr.mxu0 0.0
        %339 = vmatpush1.msra.mxu0 0.0
        %340 = vmatprep.subr.mxu0 0.0
        %341 = vmatpush1.msra.mxu0 0.0
        %342 = vmatprep.subr.mxu0 0.0
        %343 = vmatpush1.msra.mxu0 %v314
        %344 = vmatprep.subr.mxu0 0.0
        %345 = vmatpush1.msra.mxu0 %v313
        %346 = vmatprep.subr.mxu0 0.0
        %347 = vmatpush1.msra.mxu0 %v312
        %348 = vmatprep.subr.mxu0 0.0
        %349 = vmatpush1.msra.mxu0 %v311
        %350 = vmatprep.subr.mxu0 0.0
        %351 = vmatpush1.msra.mxu0 %v310
        %352 = vmatprep.subr.mxu0 0.0
        %353 = vmatpush1.msra.mxu0 %v309
        %354 = vmatprep.subr.mxu0 0.0
        %355 = vmatpush1.msra.mxu0 %v308
        %356 = vmatprep.subr.mxu0 0.0
        %357 = vmatpush1.msra.mxu0 %v307
        %358 = vmatprep.subr.mxu0 0.0
        %359 = vmatpush2.msra.mxu0 0.0
        %360 = vmatprep.subr.mxu0 0.0
        %361 = vmatpush2.msra.mxu0 0.0
        %362 = vmatprep.subr.mxu0 0.0
        %363 = vmatpush2.msra.mxu0 0.0
        %364 = vmatprep.subr.mxu0 0.0
        %365 = vmatpush2.msra.mxu0 0.0
        %366 = vmatprep.subr.mxu0 0.0
        %367 = vmatpush2.msra.mxu0 0.0
        %368 = vmatprep.subr.mxu0 0.0
        %369 = vmatpush2.msra.mxu0 0.0
        %370 = vmatprep.subr.mxu0 0.0
        %371 = vmatpush2.msra.mxu0 0.0
        %372 = vmatprep.subr.mxu0 0.0
        %373 = vmatpush2.msra.mxu0 0.0
        %374 = vmatprep.subr.mxu0 0.0
        %375 = vmatpush2.msra.mxu0 0.0
        %376 = vmatprep.subr.mxu0 0.0
        %377 = vmatpush2.msra.mxu0 0.0
        %378 = vmatprep.subr.mxu0 0.0
        %379 = vmatpush2.msra.mxu0 0.0
        %380 = vmatprep.subr.mxu0 0.0
        %381 = vmatpush2.msra.mxu0 0.0
        %382 = vmatprep.subr.mxu0 0.0
        %383 = vmatpush2.msra.mxu0 0.0
        %384 = vmatprep.subr.mxu0 0.0
        %385 = vmatpush2.msra.mxu0 0.0
        %386 = vmatprep.subr.mxu0 0.0
        %387 = vmatpush2.msra.mxu0 0.0
        %388 = vmatprep.subr.mxu0 0.0
        %389 = vmatpush2.msra.mxu0 0.0
        %390 = vmatprep.mubr.f32.mxu0 0.0
        %391 = vmatmul.mubr.f32.gmra.mxu0 %v324
        %v392 = vpop.f32.mrf.mxu0
        %v393 = vadd.f32 %v320, %v392
        %v394 = vpop.f32.mrf.mxu0
        %395 = vdwg.mxu0
        %396 = vst.msk [vmem:[%s215] sm:$0xff] %vm232, %v393
        %s397 = sand.u32 %s137, 1
        %s398 = scalar_lea.sflag [#allocation3], %s397
        %s399 = sand.u32 %s137, 1
        %s400 = smul.addr %s399, 8
        %s401 = scalar_lea.vmem [#allocation2], %s400
        // Predicated region
        $region41: #{tpu_custom_call.1} parent=39 // pred_check
          %p402 = pneg %p147
        $region42: #{tpu_custom_call.1} parent=39 // pred_check_branch
          %404 = sbr.rel (%p402) target = $region44
        $region43: #{tpu_custom_call.1} parent=39 // pred_region
          %s406 = ssub.s32 128, 128
          %407 = vsyncadd %s398, %s406
          %s408 = smul.addr %s19, 128
          %s409 = scalar_lea.hbm %s5, %s408
          %s411 = sshll.u32 %s401, 4
          %s412 = int_to_ptr.vmem [resolvable:$true] %s411
          %414 = dma.vmem_to_hbm [thread:$0]  %s412, 128, %s409, %s398
        $region44: #{tpu_custom_call.1} parent=39 // pred_fallthru
          _
      $region40: #{tpu_custom_call.1} parent=5 // pred_fallthru
        _
      %p415 = scmp.le.s32.totalorder 2, %s14
      // Predicated region
      $region45: #{tpu_custom_call.1} parent=5 // pred_check
        %p416 = pneg %p415
      $region46: #{tpu_custom_call.1} parent=5 // pred_check_branch
        %418 = sbr.rel (%p416) target = $region48
      $region47: #{tpu_custom_call.1} parent=5 // pred_region
        %s419 = ssub.s32 %s14, 2
        // Predicated region
        $region49: #{tpu_custom_call.1} parent=47 // pred_check
          %p420 = pneg %p153
        $region50: #{tpu_custom_call.1} parent=47 // pred_check_branch
          %422 = sbr.rel (%p420) target = $region52
        $region51: #{tpu_custom_call.1} parent=47 // pred_region
          %s423 = sand.u32 %s138, 1
          %s424 = scalar_lea.sflag [#allocation3], %s423
          %s425 = sand.u32 %s138, 1
          %s426 = smul.addr %s425, 8
          %s427 = scalar_lea.vmem [#allocation2], %s426
          %428 = dma.done %s424, 128
        $region52: #{tpu_custom_call.1} parent=47 // pred_fallthru
          _
      $region48: #{tpu_custom_call.1} parent=5 // pred_fallthru
        _
    $region6: #{tpu_custom_call.1} parent=1 // loop_footer
      %s18 = sadd.s32 1, %s14
    $region7: #{tpu_custom_call.1} parent=1 // loop_footer_branch
      %13 = sbr.rel target = $region3
    $region8: #{tpu_custom_call.1} parent=1 // loop_exit
      _
    %429 = vsyncpa [#allocation3], 1
    %s430 = scalar_lea.sflag [#allocation3], 1
    %431 = vsyncpa %s430, 1

</llo_original>
